<compile_context>
chip_gen: v7x
topology: tpu7x:2x2x1
jax: 0.10.0
libtpu: 0.0.40
codegen_flags: <defaults>
</compile_context>

<pallas_src>
import jax
import jax.numpy as jnp
from jax.experimental import pallas as pl
from jax.experimental.pallas import tpu as pltpu

_F = 20           # in/out features of the shared linear layer
_MAX_BATCH = 8    # x is padded into a single (8,128) sublane panel

# Row offsets inside the pre-packed static parameter slab (272, 128):
_WF_ROW = 0       # rows   0:128  -> Wf = W^T @ rand_weight   (padded 128x128)
_WT_ROW = 128     # rows 128:256  -> W^T                      (padded 128x128)
_BF_ROW = 256     # rows 256:264  -> bf = b @ rand_weight + 1 (rows 0:batch)
_B_ROW = 264      # rows 264:272  -> b                        (rows 0:batch)


def fancy_mlp_kernel(x_ref, params_ref, out_ref):
    x = x_ref[...]                                   # (8, 128) zero-padded
    wf = params_ref[_WF_ROW:_WF_ROW + 128, :]        # (128, 128)
    wt = params_ref[_WT_ROW:_WT_ROW + 128, :]        # (128, 128)
    bf = params_ref[_BF_ROW:_BF_ROW + 8, :]          # (8, 128)
    b = params_ref[_B_ROW:_B_ROW + 8, :]             # (8, 128)

    # relu((x@W^T + b) @ rw + 1) == relu(x @ (W^T@rw) + (b@rw + 1))
    h1 = jnp.maximum(
        jnp.dot(x, wf, preferred_element_type=jnp.float32) + bf, 0.0)
    # second application of the shared linear layer
    h = jnp.dot(h1, wt, preferred_element_type=jnp.float32) + b
    # Pad rows/cols of h are exactly 0 (zero operand rows/cols, zero bias
    # pad), so reductions over the full (8,128) panel equal the reference.

    total = jnp.sum(h)                               # reduce once, scale after
    sumsq = jnp.maximum(jnp.sum(h * h), jnp.float32(1e-30))  # ||h||_F^2

    # while norm > 1: h /= 2   ->   n = ceil(log4(sumsq)) halvings (n >= 0).
    # +-1 guards against log2 rounding; sumsq * 4^-k is exact in fp32.
    n = jnp.where(sumsq > 1.0,
                  jnp.ceil(0.5 * jnp.log2(sumsq)),
                  jnp.float32(0.0))
    n = jnp.maximum(n, 0.0)
    n = jnp.where(sumsq * jnp.exp2(-2.0 * n) > 1.0, n + 1.0, n)   # undershoot
    n = jnp.where(jnp.logical_and(n > 0.0,
                                  sumsq * jnp.exp2(-2.0 * (n - 1.0)) <= 1.0),
                  n - 1.0, n)                                     # overshoot
    scale = jnp.exp2(-n)
    sumsq_after = sumsq * scale * scale

    # if norm < 0.8: h *= 10   (compared in the squared domain)
    scale = jnp.where(sumsq_after < 0.64, scale * 10.0, scale)

    # return h.sum() == sum(h) * scale  -> scalar straight to SMEM
    out_ref[0, 0] = total * scale


def pack_params(w, b, rand_weight, batch):
    """One-time (init-path) packing of all static operands, padded & aligned."""
    assert batch <= _MAX_BATCH, "slab layout assumes batch <= 8"
    wt = jnp.transpose(w).astype(jnp.float32)            # (in, out)
    rw = rand_weight.astype(jnp.float32)
    bv = b.astype(jnp.float32).reshape(1, _F)
    wf = wt @ rw                                         # fold first linear
    bf = bv @ rw + 1.0                                   # fold bias + the +1

    params = jnp.zeros((272, 128), jnp.float32)
    params = params.at[_WF_ROW:_WF_ROW + _F, 0:_F].set(wf)
    params = params.at[_WT_ROW:_WT_ROW + _F, 0:_F].set(wt)
    params = params.at[_BF_ROW:_BF_ROW + batch, 0:_F].set(
        jnp.broadcast_to(bf, (batch, _F)))
    params = params.at[_B_ROW:_B_ROW + batch, 0:_F].set(
        jnp.broadcast_to(bv, (batch, _F)))
    return params


@jax.jit
def fancy_mlp_apply(x, params):
    """Per-call path: only pads x and launches the kernel."""
    batch = x.shape[0]
    assert batch <= _MAX_BATCH, "slab layout assumes batch <= 8"
    x_pad = jnp.zeros((_MAX_BATCH, 128), jnp.float32)
    x_pad = x_pad.at[0:batch, 0:_F].set(x.astype(jnp.float32))

    out = pl.pallas_call(
        fancy_mlp_kernel,
        out_shape=jax.ShapeDtypeStruct((1, 1), jnp.float32),
        in_specs=[pl.BlockSpec(memory_space=pltpu.MemorySpace.VMEM),
                  pl.BlockSpec(memory_space=pltpu.MemorySpace.VMEM)],
        out_specs=pl.BlockSpec(memory_space=pltpu.MemorySpace.SMEM),
    )(x_pad, params)
    return out[0, 0]


def reference(x, w, b, rand_weight):
    """Pure-JAX mirror of the PyTorch forward (data-dependent while-loop)."""
    h = x @ w.T + b
    h = jnp.maximum(h @ rand_weight + 1.0, 0.0)
    h = h @ w.T + b
    h = jax.lax.while_loop(lambda v: jnp.linalg.norm(v) > 1.0,
                           lambda v: v / 2.0, h)
    h = jnp.where(jnp.linalg.norm(h) < 0.8, h * 10.0, h)
    return jnp.sum(h)


def init_params(key):
    # Deterministic synthetic init mirroring the PyTorch module:
    #   rand_weight ~ U[0, 1)                       (torch.rand((20, 20)))
    #   nn.Linear(20, 20): W, b ~ U(-1/sqrt(20), 1/sqrt(20))
    k_rw, k_w, k_b = jax.random.split(key, 3)
    bound = 1.0 / jnp.sqrt(20.0)
    rand_weight = jax.random.uniform(k_rw, (_F, _F), dtype=jnp.float32)
    w = jax.random.uniform(k_w, (_F, _F), dtype=jnp.float32,
                           minval=-bound, maxval=bound)
    b = jax.random.uniform(k_b, (_F,), dtype=jnp.float32,
                           minval=-bound, maxval=bound)
    return w, b, rand_weight


if __name__ == "__main__":
    key = jax.random.PRNGKey(0)
    k_x, k_p = jax.random.split(key)
    # forward implies (batch, 20); use batch=2
    x = jax.random.uniform(k_x, (2, _F), dtype=jnp.float32)
    w, b, rand_weight = init_params(k_p)

    params = pack_params(w, b, rand_weight, batch=x.shape[0])  # init-time only
    out = fancy_mlp_apply(x, params)
    jax.block_until_ready(out)

    ref = reference(x, w, b, rand_weight)
    assert jnp.allclose(out, ref, rtol=1e-2, atol=1e-2), (out, ref)

    print("KERNEL_OK")
</pallas_src>

<mosaic_0001>
module attributes {stable_mosaic.version = 11 : i64} {
  func.func @fancy_mlp_kernel(%arg0: memref<8x128xf32, #tpu.memory_space<vmem>>, %arg1: memref<272x128xf32, #tpu.memory_space<vmem>>, %arg2: memref<1x1xf32, #tpu.memory_space<smem>>) attributes {dimension_semantics = [], scalar_prefetch = 0 : i64, scratch_operands = 0 : i64, tpu.core_type = #tpu.core_type<tc>} {
    %c0 = arith.constant 0 : index
    %c0_0 = arith.constant 0 : index
    %0 = vector.load %arg0[%c0, %c0_0] : memref<8x128xf32, #tpu.memory_space<vmem>>, vector<8x128xf32>
    %c0_1 = arith.constant 0 : index
    %c0_2 = arith.constant 0 : index
    %1 = vector.load %arg1[%c0_1, %c0_2] : memref<272x128xf32, #tpu.memory_space<vmem>>, vector<128x128xf32>
    %c128 = arith.constant 128 : index
    %c0_3 = arith.constant 0 : index
    %2 = vector.load %arg1[%c128, %c0_3] : memref<272x128xf32, #tpu.memory_space<vmem>>, vector<128x128xf32>
    %c256 = arith.constant 256 : index
    %c0_4 = arith.constant 0 : index
    %3 = vector.load %arg1[%c256, %c0_4] : memref<272x128xf32, #tpu.memory_space<vmem>>, vector<8x128xf32>
    %c264 = arith.constant 264 : index
    %c0_5 = arith.constant 0 : index
    %4 = vector.load %arg1[%c264, %c0_5] : memref<272x128xf32, #tpu.memory_space<vmem>>, vector<8x128xf32>
    %cst = arith.constant dense<0.000000e+00> : vector<8x128xf32>
    %5 = tpu.matmul %0, %1, %cst {dimension_numbers = #tpu.dot_dimension_numbers<[1], [0], [0], [1], [0, 0, 1, 1], [], []>} : vector<8x128xf32>, vector<128x128xf32>, vector<8x128xf32> -> vector<8x128xf32>
    %6 = arith.addf %5, %3 : vector<8x128xf32>
    %cst_6 = arith.constant 0.000000e+00 : f32
    %7 = vector.broadcast %cst_6 : f32 to vector<8x128xf32>
    %8 = arith.maximumf %6, %7 : vector<8x128xf32>
    %cst_7 = arith.constant dense<0.000000e+00> : vector<8x128xf32>
    %9 = tpu.matmul %8, %2, %cst_7 {dimension_numbers = #tpu.dot_dimension_numbers<[1], [0], [0], [1], [0, 0, 1, 1], [], []>} : vector<8x128xf32>, vector<128x128xf32>, vector<8x128xf32> -> vector<8x128xf32>
    %10 = arith.addf %9, %4 : vector<8x128xf32>
    %11 = vector.shape_cast %10 : vector<8x128xf32> to vector<1x8x128xf32>
    %cst_8 = arith.constant dense<0.000000e+00> : vector<1xf32>
    %12 = vector.multi_reduction <add>, %11, %cst_8 [1, 2] : vector<1x8x128xf32> to vector<1xf32>
    %13 = vector.shape_cast %12 : vector<1xf32> to vector<1x1x1xf32>
    %14 = vector.extract %13[0, 0, 0] : f32 from vector<1x1x1xf32>
    %15 = arith.mulf %10, %10 : vector<8x128xf32>
    %16 = vector.shape_cast %15 : vector<8x128xf32> to vector<1x8x128xf32>
    %cst_9 = arith.constant dense<0.000000e+00> : vector<1xf32>
    %17 = vector.multi_reduction <add>, %16, %cst_9 [1, 2] : vector<1x8x128xf32> to vector<1xf32>
    %18 = vector.shape_cast %17 : vector<1xf32> to vector<1x1x1xf32>
    %19 = vector.extract %18[0, 0, 0] : f32 from vector<1x1x1xf32>
    %cst_10 = arith.constant 1.000000e-30 : f32
    %20 = arith.maximumf %19, %cst_10 : f32
    %cst_11 = arith.constant 1.000000e+00 : f32
    %21 = arith.cmpf ogt, %20, %cst_11 : f32
    %22 = math.log %20 : f32
    %cst_12 = arith.constant 2.000000e+00 : f32
    %23 = math.log %cst_12 : f32
    %24 = arith.divf %22, %23 : f32
    %cst_13 = arith.constant 5.000000e-01 : f32
    %25 = arith.mulf %cst_13, %24 : f32
    %26 = math.ceil %25 : f32
    %cst_14 = arith.constant 0.000000e+00 : f32
    %27 = arith.select %21, %26, %cst_14 : f32
    %cst_15 = arith.constant 0.000000e+00 : f32
    %28 = arith.maximumf %27, %cst_15 : f32
    %cst_16 = arith.constant -2.000000e+00 : f32
    %29 = arith.mulf %cst_16, %28 : f32
    %30 = math.exp2 %29 : f32
    %31 = arith.mulf %20, %30 : f32
    %cst_17 = arith.constant 1.000000e+00 : f32
    %32 = arith.cmpf ogt, %31, %cst_17 : f32
    %cst_18 = arith.constant 1.000000e+00 : f32
    %33 = arith.addf %28, %cst_18 : f32
    %34 = arith.select %32, %33, %28 : f32
    %cst_19 = arith.constant 0.000000e+00 : f32
    %35 = arith.cmpf ogt, %34, %cst_19 : f32
    %cst_20 = arith.constant 1.000000e+00 : f32
    %36 = arith.subf %34, %cst_20 : f32
    %cst_21 = arith.constant -2.000000e+00 : f32
    %37 = arith.mulf %cst_21, %36 : f32
    %38 = math.exp2 %37 : f32
    %39 = arith.mulf %20, %38 : f32
    %cst_22 = arith.constant 1.000000e+00 : f32
    %40 = arith.cmpf ole, %39, %cst_22 : f32
    %41 = arith.andi %35, %40 : i1
    %cst_23 = arith.constant 1.000000e+00 : f32
    %42 = arith.subf %34, %cst_23 : f32
    %43 = arith.select %41, %42, %34 : f32
    %cst_24 = arith.constant 0.000000e+00 : f32
    %44 = arith.subf %cst_24, %43 : f32
    %45 = math.exp2 %44 : f32
    %46 = arith.mulf %20, %45 : f32
    %47 = arith.mulf %46, %45 : f32
    %cst_25 = arith.constant 6.400000e-01 : f32
    %48 = arith.cmpf olt, %47, %cst_25 : f32
    %cst_26 = arith.constant 1.000000e+01 : f32
    %49 = arith.mulf %45, %cst_26 : f32
    %50 = arith.select %48, %49, %45 : f32
    %51 = arith.mulf %14, %50 : f32
    %c0_27 = arith.constant 0 : index
    %c0_28 = arith.constant 0 : index
    %52 = memref.load %arg2[%c0_27, %c0_28] : memref<1x1xf32, #tpu.memory_space<smem>>
    memref.store %51, %arg2[%c0_27, %c0_28] : memref<1x1xf32, #tpu.memory_space<smem>>
    return
  }
}

</mosaic_0001>

<llo_original>
// kernel: fancy_mlp_apply.1
$region0: #{fancy_mlp_apply.1}
  #allocation0 [shape = 'u32[]', space=smem, size = 0x4, offset = 0x4, fixed_abs, tag = 'smem constant byte address 0x4 - core index']
  #allocation1 [shape = 'u32[144,128]{1,0:T(1,128)}', space=vmem, size = 0x12000, scoped, tag = 'internal scratch']
  %s0 = inlined_call_operand.vmem [shape: f32[8,128], index: 0, kind: input, shape index: {}]
  %s1 = inlined_call_operand.hbm [shape: f32[272,128], index: 1, kind: input, shape index: {}]
  %s2 = inlined_call_operand.hbm [shape: f32[1,1], index: 2, kind: output, shape index: {}]
  %s3 = sld [smem:[#allocation0]]
  $region22: #{fancy_mlp_apply.1} parent=0
    _
  %s5 = ssub.s32 1, %s3
  %s6 = scalar_select 0, %s5, %s3
  $region1: #{fancy_mlp_apply.1} parent=0
    #allocation2 [shape = 'u8[139264]{0}', space=vmem, size = 0x22000, scoped, tag = 'input window, operand 1, single buffered']
    #allocation3 [shape = 's32[1]{0}', space=sflag, size = 0x4, scoped, tag = 'scoped memory for fancy_mlp_apply.1']
    #allocation4 [shape = 's32[1]{0}', space=sflag, size = 0x4, scoped, tag = 'scoped memory for fancy_mlp_apply.1']
    #allocation5 [shape = 'u8[512]{0}', space=smem, size = 0x200, scoped, tag = 'output window, operand 0, single buffered']
    %7 = vsyncpa [#allocation3], 0
    %8 = vsyncpa [#allocation4], 0
    // Predicated region
    $region2: #{fancy_mlp_apply.1} parent=1 // pred_check
      _
    $region3: #{fancy_mlp_apply.1} parent=1 // pred_check_branch
      %10 = sbr.rel (0) target = $region5
    $region4: #{fancy_mlp_apply.1} parent=1 // pred_region
      _
    $region5: #{fancy_mlp_apply.1} parent=1 // pred_fallthru
      _
    // Predicated region
    $region6: #{fancy_mlp_apply.1} parent=1 // pred_check
      _
    $region7: #{fancy_mlp_apply.1} parent=1 // pred_check_branch
      %12 = sbr.rel (0) target = $region9
    $region8: #{fancy_mlp_apply.1} parent=1 // pred_region
      %s14 = ssub.s32 4352, 4352
      %15 = vsyncadd [#allocation3], %s14
      %s16 = sshll.u32 [#allocation2], 4
      %s17 = int_to_ptr.vmem [resolvable:$true] %s16
      %22 = dma.hbm_to_vmem [thread:$0]  %s1, 4352, %s17, [#allocation3], 128, 128, 8
    $region9: #{fancy_mlp_apply.1} parent=1 // pred_fallthru
      _
    // Predicated region
    $region10: #{fancy_mlp_apply.1} parent=1 // pred_check
      _
    $region11: #{fancy_mlp_apply.1} parent=1 // pred_check_branch
      %24 = sbr.rel (0) target = $region13
    $region12: #{fancy_mlp_apply.1} parent=1 // pred_region
      %25 = dma.done [#allocation3], 4352
    $region13: #{fancy_mlp_apply.1} parent=1 // pred_fallthru
      _
    %v26 = vld [vmem:[%s0] sm:$0xff]
    %v27 = vld [vmem:[#allocation2] sm:$0xff]
    %v28 = vld [vmem:[#allocation2 + $0x8] sm:$0xff]
    %v29 = vld [vmem:[#allocation2 + $0x10] sm:$0xff]
    %v30 = vld [vmem:[#allocation2 + $0x18] sm:$0xff]
    %v31 = vld [vmem:[#allocation2 + $0x20] sm:$0xff]
    %v32 = vld [vmem:[#allocation2 + $0x28] sm:$0xff]
    %v33 = vld [vmem:[#allocation2 + $0x30] sm:$0xff]
    %v34 = vld [vmem:[#allocation2 + $0x38] sm:$0xff]
    %v35 = vld [vmem:[#allocation2 + $0x40] sm:$0xff]
    %v36 = vld [vmem:[#allocation2 + $0x48] sm:$0xff]
    %v37 = vld [vmem:[#allocation2 + $0x50] sm:$0xff]
    %v38 = vld [vmem:[#allocation2 + $0x58] sm:$0xff]
    %v39 = vld [vmem:[#allocation2 + $0x60] sm:$0xff]
    %v40 = vld [vmem:[#allocation2 + $0x68] sm:$0xff]
    %v41 = vld [vmem:[#allocation2 + $0x70] sm:$0xff]
    %v42 = vld [vmem:[#allocation2 + $0x78] sm:$0xff]
    %v43 = vld [vmem:[#allocation2 + $0x80] sm:$0xff]
    %v44 = vld [vmem:[#allocation2 + $0x88] sm:$0xff]
    %v45 = vld [vmem:[#allocation2 + $0x90] sm:$0xff]
    %v46 = vld [vmem:[#allocation2 + $0x98] sm:$0xff]
    %v47 = vld [vmem:[#allocation2 + $0xa0] sm:$0xff]
    %v48 = vld [vmem:[#allocation2 + $0xa8] sm:$0xff]
    %v49 = vld [vmem:[#allocation2 + $0xb0] sm:$0xff]
    %v50 = vld [vmem:[#allocation2 + $0xb8] sm:$0xff]
    %v51 = vld [vmem:[#allocation2 + $0xc0] sm:$0xff]
    %v52 = vld [vmem:[#allocation2 + $0xc8] sm:$0xff]
    %v53 = vld [vmem:[#allocation2 + $0xd0] sm:$0xff]
    %v54 = vld [vmem:[#allocation2 + $0xd8] sm:$0xff]
    %v55 = vld [vmem:[#allocation2 + $0xe0] sm:$0xff]
    %v56 = vld [vmem:[#allocation2 + $0xe8] sm:$0xff]
    %v57 = vld [vmem:[#allocation2 + $0xf0] sm:$0xff]
    %v58 = vld [vmem:[#allocation2 + $0xf8] sm:$0xff]
    %v59 = vld [vmem:[#allocation2 + $0x100] sm:$0xff]
    %v60 = vld [vmem:[#allocation2 + $0x108] sm:$0xff]
    %61 = vmatprep.subr.mxu0 0.0
    %62 = vmatpush1.msra.mxu0 %v27
    %63 = vmatprep.subr.mxu0 0.0
    %64 = vmatpush1.msra.mxu0 %v28
    %65 = vmatprep.subr.mxu0 0.0
    %66 = vmatpush1.msra.mxu0 %v29
    %67 = vmatprep.subr.mxu0 0.0
    %68 = vmatpush1.msra.mxu0 %v30
    %69 = vmatprep.subr.mxu0 0.0
    %70 = vmatpush1.msra.mxu0 %v31
    %71 = vmatprep.subr.mxu0 0.0
    %72 = vmatpush1.msra.mxu0 %v32
    %73 = vmatprep.subr.mxu0 0.0
    %74 = vmatpush1.msra.mxu0 %v33
    %75 = vmatprep.subr.mxu0 0.0
    %76 = vmatpush1.msra.mxu0 %v34
    %77 = vmatprep.subr.mxu0 0.0
    %78 = vmatpush1.msra.mxu0 %v35
    %79 = vmatprep.subr.mxu0 0.0
    %80 = vmatpush1.msra.mxu0 %v36
    %81 = vmatprep.subr.mxu0 0.0
    %82 = vmatpush1.msra.mxu0 %v37
    %83 = vmatprep.subr.mxu0 0.0
    %84 = vmatpush1.msra.mxu0 %v38
    %85 = vmatprep.subr.mxu0 0.0
    %86 = vmatpush1.msra.mxu0 %v39
    %87 = vmatprep.subr.mxu0 0.0
    %88 = vmatpush1.msra.mxu0 %v40
    %89 = vmatprep.subr.mxu0 0.0
    %90 = vmatpush1.msra.mxu0 %v41
    %91 = vmatprep.subr.mxu0 0.0
    %92 = vmatpush1.msra.mxu0 %v42
    %93 = vmatprep.subr.mxu0 0.0
    %94 = vmatpush1.msra.mxu0 0.0
    %95 = vmatprep.subr.mxu0 0.0
    %96 = vmatpush1.msra.mxu0 0.0
    %97 = vmatprep.subr.mxu0 0.0
    %98 = vmatpush1.msra.mxu0 0.0
    %99 = vmatprep.subr.mxu0 0.0
    %100 = vmatpush1.msra.mxu0 0.0
    %101 = vmatprep.subr.mxu0 0.0
    %102 = vmatpush1.msra.mxu0 0.0
    %103 = vmatprep.subr.mxu0 0.0
    %104 = vmatpush1.msra.mxu0 0.0
    %105 = vmatprep.subr.mxu0 0.0
    %106 = vmatpush1.msra.mxu0 0.0
    %107 = vmatprep.subr.mxu0 0.0
    %108 = vmatpush1.msra.mxu0 0.0
    %109 = vmatprep.subr.mxu0 0.0
    %110 = vmatpush1.msra.mxu0 0.0
    %111 = vmatprep.subr.mxu0 0.0
    %112 = vmatpush1.msra.mxu0 0.0
    %113 = vmatprep.subr.mxu0 0.0
    %114 = vmatpush1.msra.mxu0 0.0
    %115 = vmatprep.subr.mxu0 0.0
    %116 = vmatpush1.msra.mxu0 0.0
    %117 = vmatprep.subr.mxu0 0.0
    %118 = vmatpush1.msra.mxu0 0.0
    %119 = vmatprep.subr.mxu0 0.0
    %120 = vmatpush1.msra.mxu0 0.0
    %121 = vmatprep.subr.mxu0 0.0
    %122 = vmatpush1.msra.mxu0 0.0
    %123 = vmatprep.subr.mxu0 0.0
    %124 = vmatpush1.msra.mxu0 0.0
    %125 = vmatprep.mubr.f32.mxu0 0.0
    %126 = vmatmul.mubr.f32.gmra.mrb[0].mxu0 %v26
    %v127 = vpop.f32.mrb[0].mxu0
    %v128 = vadd.f32 %v59, %v127
    %v129 = vpop.f32.mrb[0].mxu0
    %130 = vdwg.mxu0
    %v131 = vmax.f32 %v128, 0.0
    %132 = vmatprep.subr.mxu0 0.0
    %133 = vmatpush1.msra.mxu0 %v43
    %134 = vmatprep.subr.mxu0 0.0
    %135 = vmatpush1.msra.mxu0 %v44
    %136 = vmatprep.subr.mxu0 0.0
    %137 = vmatpush1.msra.mxu0 %v45
    %138 = vmatprep.subr.mxu0 0.0
    %139 = vmatpush1.msra.mxu0 %v46
    %140 = vmatprep.subr.mxu0 0.0
    %141 = vmatpush1.msra.mxu0 %v47
    %142 = vmatprep.subr.mxu0 0.0
    %143 = vmatpush1.msra.mxu0 %v48
    %144 = vmatprep.subr.mxu0 0.0
    %145 = vmatpush1.msra.mxu0 %v49
    %146 = vmatprep.subr.mxu0 0.0
    %147 = vmatpush1.msra.mxu0 %v50
    %148 = vmatprep.subr.mxu0 0.0
    %149 = vmatpush1.msra.mxu0 %v51
    %150 = vmatprep.subr.mxu0 0.0
    %151 = vmatpush1.msra.mxu0 %v52
    %152 = vmatprep.subr.mxu0 0.0
    %153 = vmatpush1.msra.mxu0 %v53
    %154 = vmatprep.subr.mxu0 0.0
    %155 = vmatpush1.msra.mxu0 %v54
    %156 = vmatprep.subr.mxu0 0.0
    %157 = vmatpush1.msra.mxu0 %v55
    %158 = vmatprep.subr.mxu0 0.0
    %159 = vmatpush1.msra.mxu0 %v56
    %160 = vmatprep.subr.mxu0 0.0
    %161 = vmatpush1.msra.mxu0 %v57
    %162 = vmatprep.subr.mxu0 0.0
    %163 = vmatpush1.msra.mxu0 %v58
    %164 = vmatprep.subr.mxu0 0.0
    %165 = vmatpush1.msra.mxu0 0.0
    %166 = vmatprep.subr.mxu0 0.0
    %167 = vmatpush1.msra.mxu0 0.0
    %168 = vmatprep.subr.mxu0 0.0
    %169 = vmatpush1.msra.mxu0 0.0
    %170 = vmatprep.subr.mxu0 0.0
    %171 = vmatpush1.msra.mxu0 0.0
    %172 = vmatprep.subr.mxu0 0.0
    %173 = vmatpush1.msra.mxu0 0.0
    %174 = vmatprep.subr.mxu0 0.0
    %175 = vmatpush1.msra.mxu0 0.0
    %176 = vmatprep.subr.mxu0 0.0
    %177 = vmatpush1.msra.mxu0 0.0
    %178 = vmatprep.subr.mxu0 0.0
    %179 = vmatpush1.msra.mxu0 0.0
    %180 = vmatprep.subr.mxu0 0.0
    %181 = vmatpush1.msra.mxu0 0.0
    %182 = vmatprep.subr.mxu0 0.0
    %183 = vmatpush1.msra.mxu0 0.0
    %184 = vmatprep.subr.mxu0 0.0
    %185 = vmatpush1.msra.mxu0 0.0
    %186 = vmatprep.subr.mxu0 0.0
    %187 = vmatpush1.msra.mxu0 0.0
    %188 = vmatprep.subr.mxu0 0.0
    %189 = vmatpush1.msra.mxu0 0.0
    %190 = vmatprep.subr.mxu0 0.0
    %191 = vmatpush1.msra.mxu0 0.0
    %192 = vmatprep.subr.mxu0 0.0
    %193 = vmatpush1.msra.mxu0 0.0
    %194 = vmatprep.subr.mxu0 0.0
    %195 = vmatpush1.msra.mxu0 0.0
    %196 = vmatprep.mubr.f32.mxu0 0.0
    %197 = vmatmul.mubr.f32.gmra.mrb[0].mxu0 %v131
    %v198 = vpop.f32.mrb[0].mxu0
    %v199 = vadd.f32 %v60, %v198
    %v200 = vpop.f32.mrb[0].mxu0
    %201 = vdwg.mxu0
    %202 = vadd.xlane.f32.xlu0 %v199
    %v203 = vpop.xlane.xlu0 %202
    %v204 = vrot.slane %v203, 4
    %v205 = vadd.f32 %v203, %v204
    %v206 = vrot.slane %v205, 2
    %v207 = vadd.f32 %v205, %v206
    %v208 = vrot.slane %v207, 1
    %v209 = vadd.f32 %v207, %v208
    %s210 = vtos %v209
    %v211 = vmul.f32 %v199, %v199
    %212 = vadd.xlane.f32.xlu0 %v211
    %v213 = vpop.xlane.xlu0 %212
    %v214 = vrot.slane %v213, 4
    %v215 = vadd.f32 %v213, %v214
    %v216 = vrot.slane %v215, 2
    %v217 = vadd.f32 %v215, %v216
    %v218 = vrot.slane %v217, 1
    %v219 = vadd.f32 %v217, %v218
    %s220 = vtos %v219
    %s221 = smax.f32 %s220, 1e-30
    %p222 = scmp.gt.f32.partialorder %s221, 1.0
    %v223 = vstv %s221
    %v224 = vlog2.pop %v223
    %v225 = vmul.f32 %v224, 0.6931472
    %s226 = vtos %v225
    %v227 = vrcp.pop 0.6931472
    %s228 = vtos %v227
    %s229 = smul.f32 %s226, %s228
    %s230 = smul.f32 %s229, 0.5
    %s231 = sceil.f32 %s230
    %s232 = scalar_select %p222, %s231, 0.0
    %s233 = smax.f32 %s232, 0.0
    %s234 = smul.f32 %s233, -2.0
    %v235 = vstv %s234
    %v236 = vpow.pop %v235
    %s237 = vtos %v236
    %s238 = smul.f32 %s221, %s237
    %p239 = scmp.gt.f32.partialorder %s238, 1.0
    %s240 = sadd.f32 %s233, 1.0
    %s241 = scalar_select %p239, %s240, %s233
    %p242 = scmp.gt.f32.partialorder %s241, 0.0
    %s243 = ssub.f32 %s241, 1.0
    %s244 = smul.f32 %s243, -2.0
    %v245 = vstv %s244
    %v246 = vpow.pop %v245
    %s247 = vtos %v246
    %s248 = smul.f32 %s221, %s247
    %p249 = scmp.le.f32.partialorder %s248, 1.0
    %p250 = pnand %p242, %p249
    %p251 = pneg %p250
    %s252 = scalar_select %p251, %s243, %s241
    %s253 = ssub.f32 0.0, %s252
    %v254 = vstv %s253
    %v255 = vpow.pop %v254
    %s256 = vtos %v255
    %s257 = smul.f32 %s221, %s256
    %s258 = smul.f32 %s257, %s256
    %p259 = scmp.lt.f32.partialorder %s258, 0.64
    %s260 = smul.f32 %s256, 10.0
    %s261 = scalar_select %p259, %s260, %s256
    %s262 = smul.f32 %s210, %s261
    %s263 = scalar_lea.smem [#allocation5], 0
    %264 = sst [smem:[%s263]] %s262
    // Predicated region
    $region14: #{fancy_mlp_apply.1} parent=1 // pred_check
      _
    $region15: #{fancy_mlp_apply.1} parent=1 // pred_check_branch
      %266 = sbr.rel (0) target = $region17
    $region16: #{fancy_mlp_apply.1} parent=1 // pred_region
      %s268 = ssub.s32 16, 16
      %269 = vsyncadd [#allocation4], %s268
      %272 = dma.smem_to_hbm [#allocation5], 16, %s2, [#allocation4]
    $region17: #{fancy_mlp_apply.1} parent=1 // pred_fallthru
      _
    // Predicated region
    $region18: #{fancy_mlp_apply.1} parent=1 // pred_check
      _
    $region19: #{fancy_mlp_apply.1} parent=1 // pred_check_branch
      %274 = sbr.rel (0) target = $region21
    $region20: #{fancy_mlp_apply.1} parent=1 // pred_region
      %275 = dma.done [#allocation4], 16
    $region21: #{fancy_mlp_apply.1} parent=1 // pred_fallthru
      _
    %276 = sfence
    %277 = vsyncpa [#allocation3], 1
    %278 = vsyncpa [#allocation4], 1

</llo_original>
